<compile_context>
chip_gen: v6e
topology: v6e:2x2x1
jax: 0.10.0
libtpu: 0.0.40
codegen_flags: <defaults>
</compile_context>

<pallas_src>
import jax
import jax.numpy as jnp
from jax import lax
from jax.experimental import pallas as pl
from jax.experimental.pallas import tpu as pltpu


def cam_attention_kernel(x_ref, attn_ref, energy_ref):
    # x_ref:    (1, C, TN) bf16   -- one spatial chunk
    # attn_ref: (1, C, C)  bf16   -- output (resident across the n axis)
    # energy_ref: (C, C)   f32    -- persistent accumulator scratch
    n = pl.program_id(1)

    @pl.when(n == 0)
    def _():
        energy_ref[...] = jnp.zeros_like(energy_ref)

    x_t = x_ref[0]                                                    # (C, TN) bf16
    # energy += X_t @ X_t^T (contract over the spatial chunk), f32 accumulate.
    energy_ref[...] += lax.dot_general(
        x_t, x_t, (((1,), (1,)), ((), ())),
        preferred_element_type=jnp.float32)                           # (C, C)

    @pl.when(n == pl.num_programs(1) - 1)
    def _():
        e = energy_ref[...]
        e = e - jnp.max(e, axis=-1, keepdims=True)
        p = jnp.exp(e)
        inv = pl.reciprocal(jnp.sum(p, axis=-1, keepdims=True), approx=True)
        attn_ref[0] = (p * inv).astype(attn_ref.dtype)


def cam_apply_kernel(attn_ref, x_ref, w1_ref, c1_ref, w2_ref, c2_ref, out_ref):
    # attn_ref: (1, C, C)  bf16   -- per-batch attention (resident across n)
    # x_ref:    (1, C, TN) bf16   -- one spatial chunk
    # w1_ref:   (C4, C)    bf16   -- folded conv1 weight (BN scale included)
    # c1_ref:   (C4, 1)    f32    -- folded conv1 bias + BN shift
    # w2_ref:   (C, C4)    bf16   -- folded conv2 weight (gamma included)
    # c2_ref:   (C, 1)     f32    -- folded conv2 bias (gamma included)
    # out_ref:  (1, C, TN) f32    -- lane-dense output tile
    x_t = x_ref[0]                                                    # (C, TN) bf16

    # out = attn @ X for this spatial tile (bf16 MXU, f32 accumulate).
    out_t = jnp.dot(attn_ref[0], x_t,
                    preferred_element_type=jnp.float32)               # (C, TN) f32

    # transform: folded 1x1 conv (+BN) -> ReLU -> folded 1x1 conv (+gamma)
    h = jnp.maximum(
        jnp.dot(w1_ref[...], out_t.astype(jnp.bfloat16),
                preferred_element_type=jnp.float32) + c1_ref[...], 0.0)  # (C4, TN)
    y = jnp.dot(w2_ref[...], h.astype(jnp.bfloat16),
                preferred_element_type=jnp.float32) + c2_ref[...]        # (C, TN)

    out_ref[0] = (y + x_t.astype(jnp.float32)).astype(out_ref.dtype)  # residual


def _round_up(a, m):
    return (a + m - 1) // m * m


def _vmem_limit(buffer_bytes):
    # footprint + margin; never request the whole physical VMEM (v7x = 64 MiB/TC).
    return int(min(max(int(buffer_bytes) + (8 << 20), 16 << 20), 100 << 20))


def cam_module(x, params):
    """x: (B, C, H, W) float32 (NCHW, like PyTorch)."""
    w1, b1, bn_w, bn_b, bn_mean, bn_var, w2, b2, gamma = params
    B, C, H, W = x.shape
    C4 = C // 4
    N = H * W
    eps = 1e-5
    LANE = 128

    # --- spatial tiling: big lane-dense tiles; pad N up to TN*nN (exact) -----
    n128 = _round_up(N, LANE)
    VMEM_BUDGET = 32 * 1024 * 1024          # conservative cross-generation budget
    per_lane_bytes = 24 * C                 # dbuf'd x/out tiles + f32 intermediates
    tn_cap = min(2048, max(LANE, (VMEM_BUDGET // per_lane_bytes) // LANE * LANE))
    nN = -(-n128 // tn_cap)                 # cdiv
    TN = _round_up(-(-N // nN), LANE)       # minimal padding for nN big tiles
    N_pad = TN * nN

    # reshape + pad + bf16 cast in one host pass (zero padding is exact here).
    x3 = x.reshape(B, C, N)
    if N_pad != N:
        x3 = jnp.pad(x3, ((0, 0), (0, 0), (0, N_pad - N)))
    xb = x3.astype(jnp.bfloat16)

    # --- host-side folding of bias / BatchNorm (inference) / gamma -----------
    inv_std = 1.0 / jnp.sqrt(bn_var.astype(jnp.float32) + eps)
    s = bn_w.astype(jnp.float32) * inv_std                                  # (C4,)
    w1f = (s[:, None] * w1.astype(jnp.float32)).astype(jnp.bfloat16)        # (C4, C)
    c1f = (s * (b1.astype(jnp.float32) - bn_mean.astype(jnp.float32))
           + bn_b.astype(jnp.float32)).reshape(C4, 1)                       # (C4, 1)
    g = gamma.astype(jnp.float32)[0]
    w2f = (g * w2.astype(jnp.float32)).astype(jnp.bfloat16)                 # (C, C4)
    c2f = (g * b2.astype(jnp.float32)).reshape(C, 1)                        # (C, 1)

    # --- VMEM budgets (computed from actual buffer footprint) ----------------
    bytes_x_tile = 2 * C * TN               # bf16 tile
    bytes_out_tile = 4 * C * TN             # f32 tile
    bytes_attn = 2 * C * C                  # bf16 (C,C)
    bytes_w = 2 * C4 * C + 4 * C4 + 2 * C * C4 + 4 * C
    vmem1 = _vmem_limit(2 * bytes_x_tile + 2 * bytes_attn
                        + 4 * C * C + 16 * C * C)
    vmem2 = _vmem_limit(2 * bytes_x_tile + 2 * bytes_out_tile + 2 * bytes_attn
                        + 2 * bytes_w + 8 * C * TN + 4 * C4 * TN)

    cost1 = pl.CostEstimate(
        flops=2 * B * C * C * N_pad,
        transcendentals=B * C * C,
        bytes_accessed=B * (2 * C * N_pad + 2 * C * C))
    cost2 = pl.CostEstimate(
        flops=B * N_pad * (2 * C * C + 4 * C * C4),
        transcendentals=0,
        bytes_accessed=B * (6 * C * N_pad + 2 * C * C) + 2 * bytes_w)

    # --- pass 1: attention matrix (tiled energy reduction + softmax) ---------
    attn = pl.pallas_call(
        cam_attention_kernel,
        out_shape=jax.ShapeDtypeStruct((B, C, C), jnp.bfloat16),
        grid_spec=pltpu.PrefetchScalarGridSpec(
            num_scalar_prefetch=0,
            grid=(B, nN),
            in_specs=[pl.BlockSpec((1, C, TN), lambda b, n: (b, 0, n))],
            out_specs=pl.BlockSpec((1, C, C), lambda b, n: (b, 0, 0)),
            scratch_shapes=[pltpu.VMEM((C, C), jnp.float32)]),
        compiler_params=pltpu.CompilerParams(
            dimension_semantics=("parallel", "arbitrary"),
            vmem_limit_bytes=vmem1),
        cost_estimate=cost1,
    )(xb)

    # --- pass 2: apply attention + folded transform + residual ---------------
    out3 = pl.pallas_call(
        cam_apply_kernel,
        out_shape=jax.ShapeDtypeStruct((B, C, N_pad), jnp.float32),
        grid_spec=pltpu.PrefetchScalarGridSpec(
            num_scalar_prefetch=0,
            grid=(B, nN),
            in_specs=[
                pl.BlockSpec((1, C, C), lambda b, n: (b, 0, 0)),    # attention
                pl.BlockSpec((1, C, TN), lambda b, n: (b, 0, n)),   # x tile
                pl.BlockSpec((C4, C), lambda b, n: (0, 0)),         # W1'
                pl.BlockSpec((C4, 1), lambda b, n: (0, 0)),         # c1'
                pl.BlockSpec((C, C4), lambda b, n: (0, 0)),         # W2'
                pl.BlockSpec((C, 1), lambda b, n: (0, 0)),          # c2'
            ],
            out_specs=pl.BlockSpec((1, C, TN), lambda b, n: (b, 0, n))),
        compiler_params=pltpu.CompilerParams(
            dimension_semantics=("parallel", "parallel"),
            vmem_limit_bytes=vmem2),
        cost_estimate=cost2,
    )(attn, xb, w1f, c1f, w2f, c2f)

    out3 = out3[:, :, :N]
    return out3.reshape(B, C, H, W)


def cam_reference(x, params):
    """Pure-JAX f32 reference mirroring the PyTorch forward (inference-mode BN)."""
    w1, b1, bn_w, bn_b, bn_mean, bn_var, w2, b2, gamma = params
    B, C, H, W = x.shape
    N = H * W
    xq = x.reshape(B, C, N)
    energy = jnp.einsum('bcn,bdn->bcd', xq, xq)
    attn = jax.nn.softmax(energy, axis=-1)
    out = jnp.einsum('bcd,bdn->bcn', attn, xq)
    h = jnp.einsum('oc,bcn->bon', w1, out) + b1[None, :, None]
    eps = 1e-5
    h = ((h - bn_mean[None, :, None]) / jnp.sqrt(bn_var[None, :, None] + eps)
         * bn_w[None, :, None] + bn_b[None, :, None])
    h = jnp.maximum(h, 0.0)
    y = jnp.einsum('oc,bcn->bon', w2, h) + b2[None, :, None]
    return gamma[0] * y.reshape(B, C, H, W) + x


if __name__ == "__main__":
    # in_dim = 16 (C // 4 = 4); N = 32*32 = 1024 -> a single 1024-wide tile.
    B, C, H, W = 2, 16, 32, 32
    C4 = C // 4

    key = jax.random.PRNGKey(0)
    kx, k1, k2, k3, k4 = jax.random.split(key, 5)

    x = jax.random.normal(kx, (B, C, H, W), jnp.float32)

    # Deterministic synthetic parameters (shapes per CAM_Module.__init__).
    w1 = 0.1 * jax.random.normal(k1, (C4, C), jnp.float32)   # Conv2d(C, C//4, 1)
    b1 = 0.1 * jax.random.normal(k2, (C4,), jnp.float32)
    bn_w = jnp.full((C4,), 1.2, jnp.float32)                  # BatchNorm2d(C//4)
    bn_b = jnp.full((C4,), 0.05, jnp.float32)
    bn_mean = jnp.full((C4,), 0.02, jnp.float32)
    bn_var = jnp.full((C4,), 0.9, jnp.float32)
    w2 = 0.1 * jax.random.normal(k3, (C, C4), jnp.float32)   # Conv2d(C//4, C, 1)
    b2 = 0.1 * jax.random.normal(k4, (C,), jnp.float32)
    # Module init is zeros(1); use a nonzero value so the kernel path is exercised.
    gamma = jnp.array([0.5], jnp.float32)

    params = (w1, b1, bn_w, bn_b, bn_mean, bn_var, w2, b2, gamma)

    out = jax.block_until_ready(cam_module(x, params))
    ref = cam_reference(x, params)

    assert out.shape == (B, C, H, W)
    max_err = jnp.max(jnp.abs(out - ref))
    assert jnp.allclose(out, ref, rtol=1e-2, atol=1e-2), \
        f"max abs err = {max_err}"

    print("KERNEL_OK")
</pallas_src>

<mosaic_0001>
module attributes {stable_mosaic.version = 11 : i64} {
  func.func @cam_attention_kernel(%arg0: i32, %arg1: i32, %arg2: memref<1x16x1024xbf16, #tpu.memory_space<vmem>>, %arg3: memref<1x16x16xbf16, #tpu.memory_space<vmem>>, %arg4: memref<16x16xf32, #tpu.memory_space<vmem>>) attributes {dimension_semantics = [#tpu.dimension_semantics<parallel>, #tpu.dimension_semantics<arbitrary>], iteration_bounds = array<i64: 2, 1>, scalar_prefetch = 0 : i64, scratch_operands = 1 : i64, tpu.core_type = #tpu.core_type<tc>, window_params = [{transform_indices = @transform_0, window_bounds = array<i64: 1, 16, 1024>}, {transform_indices = @transform_1, window_bounds = array<i64: 1, 16, 16>}]} {
    %c0_i32 = arith.constant 0 : i32
    %0 = arith.cmpi eq, %arg1, %c0_i32 : i32
    %1 = arith.extui %0 : i1 to i32
    %c0_i32_0 = arith.constant 0 : i32
    %2 = arith.cmpi ne, %1, %c0_i32_0 : i32
    scf.if %2 {
      %cst_9 = arith.constant 0.000000e+00 : f32
      %12 = vector.broadcast %cst_9 : f32 to vector<16x16xf32>
      %c0_10 = arith.constant 0 : index
      %c0_11 = arith.constant 0 : index
      %13 = vector.load %arg4[%c0_10, %c0_11] : memref<16x16xf32, #tpu.memory_space<vmem>>, vector<16x16xf32>
      tpu.vector_store %arg4[%c0_10, %c0_11], %12 {strides = array<i32>} : memref<16x16xf32, #tpu.memory_space<vmem>>, vector<16x16xf32>,
    } else {
    }
    %c0 = arith.constant 0 : index
    %c0_1 = arith.constant 0 : index
    %c0_2 = arith.constant 0 : index
    %3 = vector.load %arg2[%c0, %c0_1, %c0_2] : memref<1x16x1024xbf16, #tpu.memory_space<vmem>>, vector<1x16x1024xbf16>
    %4 = vector.shape_cast %3 : vector<1x16x1024xbf16> to vector<16x1024xbf16>
    %c0_3 = arith.constant 0 : index
    %c0_4 = arith.constant 0 : index
    %5 = vector.load %arg4[%c0_3, %c0_4] : memref<16x16xf32, #tpu.memory_space<vmem>>, vector<16x16xf32>
    %cst = arith.constant dense<0.000000e+00> : vector<16x16xf32>
    %6 = tpu.matmul %4, %4, %cst {dimension_numbers = #tpu.dot_dimension_numbers<[1], [1], [0], [0], [0, 0, 1, 0], [], []>} : vector<16x1024xbf16>, vector<16x1024xbf16>, vector<16x16xf32> -> vector<16x16xf32>
    %7 = arith.addf %5, %6 : vector<16x16xf32>
    %c0_5 = arith.constant 0 : index
    %c0_6 = arith.constant 0 : index
    %8 = vector.load %arg4[%c0_5, %c0_6] : memref<16x16xf32, #tpu.memory_space<vmem>>, vector<16x16xf32>
    tpu.vector_store %arg4[%c0_5, %c0_6], %7 {strides = array<i32>} : memref<16x16xf32, #tpu.memory_space<vmem>>, vector<16x16xf32>,
    %c0_i32_7 = arith.constant 0 : i32
    %9 = arith.cmpi eq, %arg1, %c0_i32_7 : i32
    %10 = arith.extui %9 : i1 to i32
    %c0_i32_8 = arith.constant 0 : i32
    %11 = arith.cmpi ne, %10, %c0_i32_8 : i32
    scf.if %11 {
      %c0_9 = arith.constant 0 : index
      %c0_10 = arith.constant 0 : index
      %12 = vector.load %arg4[%c0_9, %c0_10] : memref<16x16xf32, #tpu.memory_space<vmem>>, vector<16x16xf32>
      %cst_11 = arith.constant dense<0xFF800000> : vector<16xf32>
      %13 = vector.multi_reduction <maximumf>, %12, %cst_11 [1] : vector<16x16xf32> to vector<16xf32>
      %14 = vector.shape_cast %13 : vector<16xf32> to vector<16x1xf32>
      %15 = vector.broadcast %14 : vector<16x1xf32> to vector<16x16xf32>
      %16 = arith.subf %12, %15 : vector<16x16xf32>
      %17 = math.exp %16 : vector<16x16xf32>
      %cst_12 = arith.constant dense<0.000000e+00> : vector<16xf32>
      %18 = vector.multi_reduction <add>, %17, %cst_12 [1] : vector<16x16xf32> to vector<16xf32>
      %19 = vector.shape_cast %18 : vector<16xf32> to vector<16x1xf32>
      %20 = tpu.reciprocal %19 {approx = true} : vector<16x1xf32> -> vector<16x1xf32>
      %21 = vector.broadcast %20 : vector<16x1xf32> to vector<16x16xf32>
      %22 = arith.mulf %17, %21 : vector<16x16xf32>
      %23 = arith.truncf %22 : vector<16x16xf32> to vector<16x16xbf16>
      %c0_13 = arith.constant 0 : index
      %c0_14 = arith.constant 0 : index
      %c0_15 = arith.constant 0 : index
      %24 = vector.load %arg3[%c0_13, %c0_14, %c0_15] : memref<1x16x16xbf16, #tpu.memory_space<vmem>>, vector<1x16x16xbf16>
      %25 = vector.shape_cast %24 : vector<1x16x16xbf16> to vector<16x16xbf16>
      %26 = vector.shape_cast %23 : vector<16x16xbf16> to vector<1x16x16xbf16>
      tpu.vector_store %arg3[%c0_13, %c0_14, %c0_15], %26 {strides = array<i32>} : memref<1x16x16xbf16, #tpu.memory_space<vmem>>, vector<1x16x16xbf16>,
    } else {
    }
    return
  }
  func.func @transform_0(%arg0: i32, %arg1: i32) -> (i32, i32, i32) {
    %c0_i32 = arith.constant 0 : i32
    %c0_i32_0 = arith.constant 0 : i32
    return %arg0, %c0_i32, %arg1 : i32, i32, i32
  }
  func.func @transform_1(%arg0: i32, %arg1: i32) -> (i32, i32, i32) {
    %c0_i32 = arith.constant 0 : i32
    %c0_i32_0 = arith.constant 0 : i32
    %c0_i32_1 = arith.constant 0 : i32
    return %arg0, %c0_i32, %c0_i32_0 : i32, i32, i32
  }
}

</mosaic_0001>

<llo_original>
// kernel: tpu_custom_call.1
$region0: #{tpu_custom_call.1}
  #allocation0 [shape = 'u32[]', space=smem, size = 0x4, offset = 0x4, fixed_abs, tag = 'smem constant byte address 0x4 - core index']
  #allocation1 [shape = 'u32[144,128]{1,0:T(1,128)}', space=vmem, size = 0x12000, scoped, tag = 'internal scratch']
  #allocation2 [shape = 'f32[16,16]{1,0:T(8,128)}', space=vmem, size = 0x2000, scoped, tag = 'scratch operand']
  %s0 = inlined_call_operand.hbm [shape: bf16[2,16,1024], index: 0, kind: input, shape index: {}]
  %s1 = inlined_call_operand.hbm [shape: bf16[2,16,16], index: 1, kind: output, shape index: {}]
  %s2 = sld [smem:[#allocation0]]
  $region49: #{tpu_custom_call.1} parent=0
    _
  %s4 = ssub.s32 1, %s2
  %s5 = scalar_select 0, %s4, %s2
  $region1: #{tpu_custom_call.1} parent=0
    #allocation3 [shape = 'u8[65536]{0}', space=vmem, size = 0x10000, scoped, tag = 'input window, operand 0']
    #allocation4 [shape = 's32[2]{0}', space=sflag, size = 0x8, scoped, tag = 'scoped memory for tpu_custom_call.1']
    #allocation5 [shape = 's32[2]{0}', space=sflag, size = 0x8, scoped, tag = 'scoped memory for tpu_custom_call.1']
    #allocation6 [shape = 'u8[8192]{0}', space=vmem, size = 0x2000, scoped, tag = 'output window, operand 0']
    %6 = vsyncpa [#allocation4], 0
    %s7 = scalar_lea.sflag [#allocation4], 1
    %8 = vsyncpa %s7, 0
    %9 = vsyncpa [#allocation5], 0
    %s10 = scalar_lea.sflag [#allocation5], 1
    %11 = vsyncpa %s10, 0
    loop: start=0, step=1, limit=4
    $region2: #{tpu_custom_call.1} parent=1 // loop_pre_header
      _
    $region3: #{tpu_custom_call.1} parent=1 // loop_header
      %s13 = sphi 0, %s17
      %p14 = scmp.ge.s32.totalorder %s13, 4
      %s20 = sphi 0, %s32
      %s21 = sphi 0, %s28
      %s22 = sphi 0, %s20
      %s23 = sphi 0, %s21
      %s24 = sphi 0, %s22
      %s25 = sphi 0, %s23
      %s37 = sphi 0, %s39
      %s40 = sphi 0, %s37
      %s41 = sphi 0, %s40
      %s57 = sphi 0, %s41
      %s63 = sphi 0, %s65
      %s66 = sphi 0, %s63
      %s67 = sphi 0, %s66
      %s83 = sphi 0, %s67
    $region4: #{tpu_custom_call.1} parent=1 // loop_header_branch
      %16 = sbr.rel (%p14) target = $region8
    $region5: #{tpu_custom_call.1} parent=1 // loop_body
      %s18 = ssub.s32 %s13, 1
      %s19 = ssub.s32 %s13, 2
      %s26 = sadd.s32 1, %s21
      %p27 = scmp.ge.s32.totalorder %s26, 1
      %s28 = scalar_select %p27, 0, %s26
      %s29 = sadd.s32 1, %s20
      %s30 = scalar_select %p27, %s29, %s20
      %p31 = scmp.ge.s32.totalorder %s30, 2
      %s32 = scalar_select %p31, 0, %s30
      %s33 = ssub.s32 %s20, %s32
      %s34 = ssub.s32 %s21, %s28
      %s35 = sor.u32 %s33, %s34
      %p36 = scmp.eq.s32.totalorder %s35, 0
      %s38 = sadd.s32 %s37, 1
      %s39 = scalar_select %p36, %s37, %s38
      %p42 = pneg %p36
      %p43 = scmp.eq.s32.totalorder %s13, 1
      %p44 = por %p42, %p43
      %p45 = scmp.ne.s32.totalorder %s37, %s40
      %p46 = scmp.eq.s32.totalorder %s13, 0
      %p47 = por %p45, %p46
      %p48 = scmp.ne.s32.totalorder %s37, %s40
      %p49 = scmp.eq.s32.totalorder %s18, 1
      %p50 = por %p48, %p49
      %p51 = scmp.ne.s32.totalorder %s40, %s41
      %p52 = scmp.eq.s32.totalorder %s18, 0
      %p53 = por %p51, %p52
      %p54 = scmp.ne.s32.totalorder %s40, %s41
      %p55 = scmp.eq.s32.totalorder %s19, 1
      %p56 = por %p54, %p55
      %p58 = scmp.ne.s32.totalorder %s41, %s57
      %p59 = scmp.eq.s32.totalorder %s19, 0
      %p60 = por %p58, %p59
      %s61 = ssub.s32 %s20, %s32
      %p62 = scmp.eq.s32.totalorder %s61, 0
      %s64 = sadd.s32 %s63, 1
      %s65 = scalar_select %p62, %s63, %s64
      %p68 = pneg %p62
      %p69 = scmp.eq.s32.totalorder %s13, 1
      %p70 = por %p68, %p69
      %p71 = scmp.ne.s32.totalorder %s63, %s66
      %p72 = scmp.eq.s32.totalorder %s13, 0
      %p73 = por %p71, %p72
      %p74 = scmp.ne.s32.totalorder %s63, %s66
      %p75 = scmp.eq.s32.totalorder %s18, 1
      %p76 = por %p74, %p75
      %p77 = scmp.ne.s32.totalorder %s66, %s67
      %p78 = scmp.eq.s32.totalorder %s18, 0
      %p79 = por %p77, %p78
      %p80 = scmp.ne.s32.totalorder %s66, %s67
      %p81 = scmp.eq.s32.totalorder %s19, 1
      %p82 = por %p80, %p81
      %p84 = scmp.ne.s32.totalorder %s67, %s83
      %p85 = scmp.eq.s32.totalorder %s19, 0
      %p86 = por %p84, %p85
      %p87 = scmp.le.s32.totalorder 1, %s13
      %p88 = scmp.lt.s32.totalorder %s13, 3
      %p89 = pnand %p87, %p88
      %p90 = pneg %p89
      // Predicated region
      $region9: #{tpu_custom_call.1} parent=5 // pred_check
        _
      $region10: #{tpu_custom_call.1} parent=5 // pred_check_branch
        %92 = sbr.rel (%p89) target = $region12
      $region11: #{tpu_custom_call.1} parent=5 // pred_region
        %s93 = ssub.s32 %s13, 1
      $region12: #{tpu_custom_call.1} parent=5 // pred_fallthru
        _
      %p94 = scmp.lt.s32.totalorder %s13, 2
      // Predicated region
      $region13: #{tpu_custom_call.1} parent=5 // pred_check
        %p95 = pneg %p94
      $region14: #{tpu_custom_call.1} parent=5 // pred_check_branch
        %97 = sbr.rel (%p95) target = $region16
      $region15: #{tpu_custom_call.1} parent=5 // pred_region
        // Predicated region
        $region17: #{tpu_custom_call.1} parent=15 // pred_check
          %p98 = pneg %p47
        $region18: #{tpu_custom_call.1} parent=15 // pred_check_branch
          %100 = sbr.rel (%p98) target = $region20
        $region19: #{tpu_custom_call.1} parent=15 // pred_region
          %s101 = sand.u32 %s37, 1
          %s102 = scalar_lea.sflag [#allocation4], %s101
          %s103 = sand.u32 %s37, 1
          %s104 = smul.addr %s103, 64
          %s105 = scalar_lea.vmem [#allocation3], %s104
          %s106 = smul.u32 8, %s21
          %s108 = ssub.s32 1024, 1024
          %109 = vsyncadd %s102, %s108
          %s110 = smul.addr %s20, 16
          %s111 = sadd.s32 %s106, %s110
          %s112 = smul.addr %s111, 64
          %s113 = scalar_lea.hbm %s0, %s112
          %s114 = sshll.u32 %s105, 4
          %s115 = int_to_ptr.vmem [resolvable:$true] %s114
          %120 = dma.hbm_to_vmem [thread:$0]  %s113, 1024, %s115, %s102, 512, 512, 32
        $region20: #{tpu_custom_call.1} parent=15 // pred_fallthru
          _
      $region16: #{tpu_custom_call.1} parent=5 // pred_fallthru
        _
      %p121 = scmp.le.s32.totalorder 1, %s13
      %p122 = scmp.lt.s32.totalorder %s13, 3
      %p123 = pnand %p121, %p122
      %p124 = pneg %p123
      // Predicated region
      $region21: #{tpu_custom_call.1} parent=5 // pred_check
        _
      $region22: #{tpu_custom_call.1} parent=5 // pred_check_branch
        %126 = sbr.rel (%p123) target = $region24
      $region23: #{tpu_custom_call.1} parent=5 // pred_region
        %s127 = ssub.s32 %s13, 1
        %s128 = sand.u32 %s40, 1
        %s129 = scalar_lea.sflag [#allocation4], %s128
        %s130 = sand.u32 %s40, 1
        %s131 = smul.addr %s130, 64
        %s132 = scalar_lea.vmem [#allocation3], %s131
        // Predicated region
        $region25: #{tpu_custom_call.1} parent=23 // pred_check
          %p133 = pneg %p53
        $region26: #{tpu_custom_call.1} parent=23 // pred_check_branch
          %135 = sbr.rel (%p133) target = $region28
        $region27: #{tpu_custom_call.1} parent=23 // pred_region
          %136 = dma.done %s129, 1024
        $region28: #{tpu_custom_call.1} parent=23 // pred_fallthru
          _
        %s137 = sand.u32 %s40, 1
        %s138 = scalar_lea.sflag [#allocation4], %s137
        %s139 = sand.u32 %s40, 1
        %s140 = smul.addr %s139, 64
        %s141 = scalar_lea.vmem [#allocation3], %s140
        %p142 = pneg %p53
        %p143 = pneg %p50
        %p144 = pneg %p79
        %p145 = pneg %p76
        %s146 = sand.u32 %s66, 1
        %s147 = scalar_lea.sflag [#allocation5], %s146
        %s148 = sand.u32 %s66, 1
        %s149 = smul.addr %s148, 8
        %s150 = scalar_lea.vmem [#allocation6], %s149
        %s151 = smul.u32 8, %s23
        %p153 = scmp.eq.s32.totalorder %s23, 0
        // Predicated region
        $region29: #{tpu_custom_call.1} parent=23 // pred_check
          %p154 = pneg %p153
        $region30: #{tpu_custom_call.1} parent=23 // pred_check_branch
          %156 = sbr.rel (%p154) target = $region32
        $region31: #{tpu_custom_call.1} parent=23 // pred_region
          %vm157 = vcmask 130048
          %158 = vst.msk [vmem:[#allocation2] sm:$0xff] %vm157, 0.0
          %159 = vst.msk [vmem:[#allocation2 + $0x8] sm:$0xff] %vm157, 0.0
        $region32: #{tpu_custom_call.1} parent=23 // pred_fallthru
          _
        %v160 = vld [vmem:[%s132] sm:$0xff]
        %v161 = vld [vmem:[%s132 + $0x8] sm:$0xff]
        %v162 = vld [vmem:[%s132 + $0x10] sm:$0xff]
        %v163 = vld [vmem:[%s132 + $0x18] sm:$0xff]
        %v164 = vld [vmem:[%s132 + $0x20] sm:$0xff]
        %v165 = vld [vmem:[%s132 + $0x28] sm:$0xff]
        %v166 = vld [vmem:[%s132 + $0x30] sm:$0xff]
        %v167 = vld [vmem:[%s132 + $0x38] sm:$0xff]
        %v168 = vld [vmem:[#allocation2] sm:$0xff]
        %v169 = vld [vmem:[#allocation2 + $0x8] sm:$0xff]
        %v178 = vunpack.c.l.b16 %v160
        %v179 = vunpack.c.h.b16 %v160
        %v180 = vunpack.c.l.b16 %v161
        %v181 = vunpack.c.h.b16 %v161
        %v182 = vunpack.c.l.b16 %v162
        %v183 = vunpack.c.h.b16 %v162
        %v184 = vunpack.c.l.b16 %v163
        %v185 = vunpack.c.h.b16 %v163
        %v186 = vunpack.c.l.b16 %v164
        %v187 = vunpack.c.h.b16 %v164
        %v188 = vunpack.c.l.b16 %v165
        %v189 = vunpack.c.h.b16 %v165
        %v190 = vunpack.c.l.b16 %v166
        %v191 = vunpack.c.h.b16 %v166
        %v192 = vunpack.c.l.b16 %v167
        %v193 = vunpack.c.h.b16 %v167
        %v194 = vpack.c.b16 %v186, %v178
        %v195 = vpack.c.b16 %v187, %v179
        %v196 = vpack.c.b16 %v188, %v180
        %v197 = vpack.c.b16 %v189, %v181
        %v198 = vpack.c.b16 %v190, %v182
        %v199 = vpack.c.b16 %v191, %v183
        %v200 = vpack.c.b16 %v192, %v184
        %v201 = vpack.c.b16 %v193, %v185
        %210 = vmatprep.subr.bf16.mxu0 0
        %211 = vmatpush1.bf16.xpose.msra.mxu0 0
        %212 = vmatprep.subr.bf16.mxu0 0
        %213 = vmatpush1.bf16.xpose.msra.mxu0 0
        %214 = vmatprep.subr.bf16.mxu0 0
        %215 = vmatpush1.bf16.xpose.msra.mxu0 0
        %216 = vmatprep.subr.bf16.mxu0 0
        %217 = vmatpush1.bf16.xpose.msra.mxu0 0
        %218 = vmatprep.subr.bf16.mxu0 0
        %219 = vmatpush1.bf16.xpose.msra.mxu0 0
        %220 = vmatprep.subr.bf16.mxu0 0
        %221 = vmatpush1.bf16.xpose.msra.mxu0 0
        %222 = vmatprep.subr.bf16.mxu0 0
        %223 = vmatpush1.bf16.xpose.msra.mxu0 0
        %224 = vmatprep.subr.bf16.mxu0 %v195
        %225 = vmatpush1.bf16.xpose.msra.mxu0 %v194
        %226 = vmatprep.subr.bf16.mxu0 0
        %227 = vmatpush2.bf16.xpose.msra.mxu0 0
        %228 = vmatprep.subr.bf16.mxu0 0
        %229 = vmatpush2.bf16.xpose.msra.mxu0 0
        %230 = vmatprep.subr.bf16.mxu0 0
        %231 = vmatpush2.bf16.xpose.msra.mxu0 0
        %232 = vmatprep.subr.bf16.mxu0 0
        %233 = vmatpush2.bf16.xpose.msra.mxu0 0
        %234 = vmatprep.subr.bf16.mxu0 0
        %235 = vmatpush2.bf16.xpose.msra.mxu0 0
        %236 = vmatprep.subr.bf16.mxu0 0
        %237 = vmatpush2.bf16.xpose.msra.mxu0 0
        %238 = vmatprep.subr.bf16.mxu0 0
        %239 = vmatpush2.bf16.xpose.msra.mxu0 0
        %240 = vmatprep.subr.bf16.mxu0 0
        %241 = vmatpush2.bf16.xpose.msra.mxu0 0
        %242 = vmatprep.mubr.bf16.mxu0 %v195
        %243 = vmatmul.mubr.bf16.gmra.mxu0 %v194
        %v244 = vpop.f32.mrf.mxu0
        %v245 = vadd.f32 0.0, %v244
        %v246 = vpop.f32.mrf.mxu0
        %v247 = vpop.f32.mrf.mxu0
        %v248 = vadd.f32 0.0, %v247
        %v249 = vpop.f32.mrf.mxu0
        %250 = vdwg.mxu0
        %251 = vmatprep.subr.bf16.mxu0 0
        %252 = vmatpush1.bf16.xpose.msra.mxu0 0
        %253 = vmatprep.subr.bf16.mxu0 0
        %254 = vmatpush1.bf16.xpose.msra.mxu0 0
        %255 = vmatprep.subr.bf16.mxu0 0
        %256 = vmatpush1.bf16.xpose.msra.mxu0 0
        %257 = vmatprep.subr.bf16.mxu0 0
        %258 = vmatpush1.bf16.xpose.msra.mxu0 0
        %259 = vmatprep.subr.bf16.mxu0 0
        %260 = vmatpush1.bf16.xpose.msra.mxu0 0
        %261 = vmatprep.subr.bf16.mxu0 0
        %262 = vmatpush1.bf16.xpose.msra.mxu0 0
        %263 = vmatprep.subr.bf16.mxu0 0
        %264 = vmatpush1.bf16.xpose.msra.mxu0 0
        %265 = vmatprep.subr.bf16.mxu0 %v197
        %266 = vmatpush1.bf16.xpose.msra.mxu0 %v196
        %267 = vmatprep.subr.bf16.mxu0 0
        %268 = vmatpush2.bf16.xpose.msra.mxu0 0
        %269 = vmatprep.subr.bf16.mxu0 0
        %270 = vmatpush2.bf16.xpose.msra.mxu0 0
        %271 = vmatprep.subr.bf16.mxu0 0
        %272 = vmatpush2.bf16.xpose.msra.mxu0 0
        %273 = vmatprep.subr.bf16.mxu0 0
        %274 = vmatpush2.bf16.xpose.msra.mxu0 0
        %275 = vmatprep.subr.bf16.mxu0 0
        %276 = vmatpush2.bf16.xpose.msra.mxu0 0
        %277 = vmatprep.subr.bf16.mxu0 0
        %278 = vmatpush2.bf16.xpose.msra.mxu0 0
        %279 = vmatprep.subr.bf16.mxu0 0
        %280 = vmatpush2.bf16.xpose.msra.mxu0 0
        %281 = vmatprep.subr.bf16.mxu0 0
        %282 = vmatpush2.bf16.xpose.msra.mxu0 0
        %283 = vmatprep.mubr.bf16.mxu0 %v197
        %284 = vmatmul.mubr.bf16.gmra.mxu0 %v196
        %v285 = vpop.f32.mrf.mxu0
        %v286 = vadd.f32 %v245, %v285
        %v287 = vpop.f32.mrf.mxu0
        %v288 = vpop.f32.mrf.mxu0
        %v289 = vadd.f32 %v248, %v288
        %v290 = vpop.f32.mrf.mxu0
        %291 = vdwg.mxu0
        %292 = vmatprep.subr.bf16.mxu0 0
        %293 = vmatpush1.bf16.xpose.msra.mxu0 0
        %294 = vmatprep.subr.bf16.mxu0 0
        %295 = vmatpush1.bf16.xpose.msra.mxu0 0
        %296 = vmatprep.subr.bf16.mxu0 0
        %297 = vmatpush1.bf16.xpose.msra.mxu0 0
        %298 = vmatprep.subr.bf16.mxu0 0
        %299 = vmatpush1.bf16.xpose.msra.mxu0 0
        %300 = vmatprep.subr.bf16.mxu0 0
        %301 = vmatpush1.bf16.xpose.msra.mxu0 0
        %302 = vmatprep.subr.bf16.mxu0 0
        %303 = vmatpush1.bf16.xpose.msra.mxu0 0
        %304 = vmatprep.subr.bf16.mxu0 0
        %305 = vmatpush1.bf16.xpose.msra.mxu0 0
        %306 = vmatprep.subr.bf16.mxu0 %v199
        %307 = vmatpush1.bf16.xpose.msra.mxu0 %v198
        %308 = vmatprep.subr.bf16.mxu0 0
        %309 = vmatpush2.bf16.xpose.msra.mxu0 0
        %310 = vmatprep.subr.bf16.mxu0 0
        %311 = vmatpush2.bf16.xpose.msra.mxu0 0
        %312 = vmatprep.subr.bf16.mxu0 0
        %313 = vmatpush2.bf16.xpose.msra.mxu0 0
        %314 = vmatprep.subr.bf16.mxu0 0
        %315 = vmatpush2.bf16.xpose.msra.mxu0 0
        %316 = vmatprep.subr.bf16.mxu0 0
        %317 = vmatpush2.bf16.xpose.msra.mxu0 0
        %318 = vmatprep.subr.bf16.mxu0 0
        %319 = vmatpush2.bf16.xpose.msra.mxu0 0
        %320 = vmatprep.subr.bf16.mxu0 0
        %321 = vmatpush2.bf16.xpose.msra.mxu0 0
        %322 = vmatprep.subr.bf16.mxu0 0
        %323 = vmatpush2.bf16.xpose.msra.mxu0 0
        %324 = vmatprep.mubr.bf16.mxu0 %v199
        %325 = vmatmul.mubr.bf16.gmra.mxu0 %v198
        %v326 = vpop.f32.mrf.mxu0
        %v327 = vadd.f32 %v286, %v326
        %v328 = vpop.f32.mrf.mxu0
        %v329 = vpop.f32.mrf.mxu0
        %v330 = vadd.f32 %v289, %v329
        %v331 = vpop.f32.mrf.mxu0
        %332 = vdwg.mxu0
        %333 = vmatprep.subr.bf16.mxu0 0
        %334 = vmatpush1.bf16.xpose.msra.mxu0 0
        %335 = vmatprep.subr.bf16.mxu0 0
        %336 = vmatpush1.bf16.xpose.msra.mxu0 0
        %337 = vmatprep.subr.bf16.mxu0 0
        %338 = vmatpush1.bf16.xpose.msra.mxu0 0
        %339 = vmatprep.subr.bf16.mxu0 0
        %340 = vmatpush1.bf16.xpose.msra.mxu0 0
        %341 = vmatprep.subr.bf16.mxu0 0
        %342 = vmatpush1.bf16.xpose.msra.mxu0 0
        %343 = vmatprep.subr.bf16.mxu0 0
        %344 = vmatpush1.bf16.xpose.msra.mxu0 0
        %345 = vmatprep.subr.bf16.mxu0 0
        %346 = vmatpush1.bf16.xpose.msra.mxu0 0
        %347 = vmatprep.subr.bf16.mxu0 %v201
        %348 = vmatpush1.bf16.xpose.msra.mxu0 %v200
        %349 = vmatprep.subr.bf16.mxu0 0
        %350 = vmatpush2.bf16.xpose.msra.mxu0 0
        %351 = vmatprep.subr.bf16.mxu0 0
        %352 = vmatpush2.bf16.xpose.msra.mxu0 0
        %353 = vmatprep.subr.bf16.mxu0 0
        %354 = vmatpush2.bf16.xpose.msra.mxu0 0
        %355 = vmatprep.subr.bf16.mxu0 0
        %356 = vmatpush2.bf16.xpose.msra.mxu0 0
        %357 = vmatprep.subr.bf16.mxu0 0
        %358 = vmatpush2.bf16.xpose.msra.mxu0 0
        %359 = vmatprep.subr.bf16.mxu0 0
        %360 = vmatpush2.bf16.xpose.msra.mxu0 0
        %361 = vmatprep.subr.bf16.mxu0 0
        %362 = vmatpush2.bf16.xpose.msra.mxu0 0
        %363 = vmatprep.subr.bf16.mxu0 0
        %364 = vmatpush2.bf16.xpose.msra.mxu0 0
        %365 = vmatprep.mubr.bf16.mxu0 %v201
        %366 = vmatmul.mubr.bf16.gmra.mxu0 %v200
        %v367 = vpop.f32.mrf.mxu0
        %v368 = vadd.f32 %v327, %v367
        %v369 = vpop.f32.mrf.mxu0
        %v370 = vpop.f32.mrf.mxu0
        %v371 = vadd.f32 %v330, %v370
        %v372 = vpop.f32.mrf.mxu0
        %373 = vdwg.mxu0
        %v374 = vadd.f32 %v168, %v368
        %v375 = vadd.f32 %v169, %v371
        %vm376 = vcmask 130048
        %377 = vst.msk [vmem:[#allocation2] sm:$0xff] %vm376, %v374
        %378 = vst.msk [vmem:[#allocation2 + $0x8] sm:$0xff] %vm376, %v375
        // Predicated region
        $region33: #{tpu_custom_call.1} parent=23 // pred_check
          %p379 = pneg %p153
        $region34: #{tpu_custom_call.1} parent=23 // pred_check_branch
          %381 = sbr.rel (%p379) target = $region36
        $region35: #{tpu_custom_call.1} parent=23 // pred_region
          %v382 = vld [vmem:[#allocation2] sm:$0xff]
          %v383 = vld [vmem:[#allocation2 + $0x8] sm:$0xff]
          %v384 = vsel %vm376, %v382, -inf
          %385 = vmax.xlane.f32.xlu0 %v384
          %v386 = vpop.xlane.xlu0 %385
          %v387 = vsel %vm376, %v383, -inf
          %388 = vmax.xlane.f32.xlu0 %v387
          %v389 = vpop.xlane.xlu0 %388
          %v390 = vsub.f32 %v382, %v386
          %v391 = vsub.f32 %v383, %v389
          %v392 = vmul.f32 %v390, 1.442695
          %v393 = vpow.pop %v392
          %v394 = vmul.f32 %v391, 1.442695
          %v395 = vpow.pop %v394
          %v396 = vsel %vm376, %v393, 0.0
          %397 = vadd.xlane.f32.xlu0 %v396
          %v398 = vpop.xlane.xlu0 %397
          %v399 = vsel %vm376, %v395, 0.0
          %400 = vadd.xlane.f32.xlu0 %v399
          %v401 = vpop.xlane.xlu0 %400
          %v402 = vrcp.pop %v398
          %v403 = vrcp.pop %v401
          %v404 = vmul.f32 %v393, %v402
          %v405 = vmul.f32 %v395, %v403
          %v406 = vpack.c.bf16 %v405, %v404
          %v408 = vunpack.c.l.b16 %v406
          %v409 = vunpack.c.h.b16 %v406
          %v410 = vpack.c.b16 %v408, %v408
          %v411 = vpack.c.b16 %v409, %v409
          %vm414 = vcmask 125952
          %415 = vst.msk [vmem:[%s150] sm:$0xf] %vm414, %v410
          %416 = vst.msk [vmem:[%s150 + $0x4] sm:$0xf] %vm414, %v411
        $region36: #{tpu_custom_call.1} parent=23 // pred_fallthru
          _
        %s417 = sand.u32 %s66, 1
        %s418 = scalar_lea.sflag [#allocation5], %s417
        %s419 = sand.u32 %s66, 1
        %s420 = smul.addr %s419, 8
        %s421 = scalar_lea.vmem [#allocation6], %s420
        // Predicated region
        $region37: #{tpu_custom_call.1} parent=23 // pred_check
          %p422 = pneg %p76
        $region38: #{tpu_custom_call.1} parent=23 // pred_check_branch
          %424 = sbr.rel (%p422) target = $region40
        $region39: #{tpu_custom_call.1} parent=23 // pred_region
          %s426 = ssub.s32 128, 128
          %427 = vsyncadd %s418, %s426
          %s428 = smul.addr %s22, 2
          %s429 = smul.addr %s428, 64
          %s430 = scalar_lea.hbm %s1, %s429
          %s431 = sshll.u32 %s421, 4
          %s432 = int_to_ptr.vmem [resolvable:$true] %s431
          %437 = dma.vmem_to_hbm [thread:$0]  %s432, 128, %s430, %s418, 64, 64, 4
        $region40: #{tpu_custom_call.1} parent=23 // pred_fallthru
          _
      $region24: #{tpu_custom_call.1} parent=5 // pred_fallthru
        _
      %p438 = scmp.le.s32.totalorder 2, %s13
      // Predicated region
      $region41: #{tpu_custom_call.1} parent=5 // pred_check
        %p439 = pneg %p438
      $region42: #{tpu_custom_call.1} parent=5 // pred_check_branch
        %441 = sbr.rel (%p439) target = $region44
      $region43: #{tpu_custom_call.1} parent=5 // pred_region
        %s442 = ssub.s32 %s13, 2
        // Predicated region
        $region45: #{tpu_custom_call.1} parent=43 // pred_check
          %p443 = pneg %p82
        $region46: #{tpu_custom_call.1} parent=43 // pred_check_branch
          %445 = sbr.rel (%p443) target = $region48
        $region47: #{tpu_custom_call.1} parent=43 // pred_region
          %s446 = sand.u32 %s67, 1
          %s447 = scalar_lea.sflag [#allocation5], %s446
          %s448 = sand.u32 %s67, 1
          %s449 = smul.addr %s448, 8
          %s450 = scalar_lea.vmem [#allocation6], %s449
          %451 = dma.done %s447, 128
        $region48: #{tpu_custom_call.1} parent=43 // pred_fallthru
          _
      $region44: #{tpu_custom_call.1} parent=5 // pred_fallthru
        _
    $region6: #{tpu_custom_call.1} parent=1 // loop_footer
      %s17 = sadd.s32 1, %s13
    $region7: #{tpu_custom_call.1} parent=1 // loop_footer_branch
      %12 = sbr.rel target = $region3
    $region8: #{tpu_custom_call.1} parent=1 // loop_exit
      _
    %452 = vsyncpa [#allocation4], 1
    %s453 = scalar_lea.sflag [#allocation4], 1
    %454 = vsyncpa %s453, 1
    %455 = vsyncpa [#allocation5], 1
    %s456 = scalar_lea.sflag [#allocation5], 1
    %457 = vsyncpa %s456, 1

</llo_original>
